<compile_context>
chip_gen: v5e
topology: v5e:2x2
jax: 0.10.0
libtpu: 0.0.40
codegen_flags: <defaults>
</compile_context>

<pallas_src>
import jax
import jax.numpy as jnp
from jax.experimental import pallas as pl
from jax.experimental.pallas import tpu as pltpu


def _conv1x1_abs_kernel(x_ref, w_ref, b_ref, o_ref):
    # x_ref: (N, Cin, M') lane-dense   w_ref: (Cout, Cin)   b_ref: (Cout, 1)
    # o_ref: (N, Cout, M') lane-dense
    x = x_ref[...]
    w = w_ref[...]
    b = b_ref[...]
    cin = x.shape[1]

    # Outer-product broadcast FMAs on the VPU, batched over N (MXU skipped on
    # purpose: the 3x8 contraction would waste almost every MXU row/column).
    acc = w[None, :, 0:1] * x[:, 0:1, :]                    # (N, Cout, M')
    for ci in range(1, cin):
        acc = acc + w[None, :, ci:ci + 1] * x[:, ci:ci + 1, :]
    acc = acc + b[None, :, :]                               # bias over batch & lanes

    # v6 = v1 * sign(v1) == |v1|
    o_ref[...] = jnp.abs(acc).astype(o_ref.dtype)


def conv1x1_pad1_abs(x_nchw, weight, bias):
    """Conv2d(Cin->Cout, k=1, stride=1, padding=1) followed by v1*sign(v1).

    x_nchw: (N, Cin, H, W); weight: (Cout, Cin, 1, 1); bias: (Cout,).
    Returns (N, Cout, H+2, W+2) float32."""
    N, Cin, H, W = x_nchw.shape
    Cout = weight.shape[0]
    Ho, Wo = H + 2, W + 2
    Mp = Ho * Wo                                            # padded spatial on lanes

    # Zero-pad once (input is tiny) and flatten -> channels-leading, lane-dense
    # layout; the border then comes out of the same FMAs as |bias| for free.
    xp = jnp.pad(x_nchw.astype(jnp.float32), ((0, 0), (0, 0), (1, 1), (1, 1)))
    x_flat = xp.reshape(N, Cin, Mp)
    w_mat = weight.reshape(Cout, Cin).astype(jnp.float32)
    b_col = bias.reshape(Cout, 1).astype(jnp.float32)

    out_flat = pl.pallas_call(
        _conv1x1_abs_kernel,
        out_shape=jax.ShapeDtypeStruct((N, Cout, Mp), jnp.float32),
        # Single step: whole arrays live in VMEM (~30 KB total at these sizes).
        in_specs=[
            pl.BlockSpec(memory_space=pltpu.MemorySpace.VMEM),   # x (lane-dense)
            pl.BlockSpec(memory_space=pltpu.MemorySpace.VMEM),   # weights (tiny)
            pl.BlockSpec(memory_space=pltpu.MemorySpace.VMEM),   # bias column
        ],
        out_specs=pl.BlockSpec(memory_space=pltpu.MemorySpace.VMEM),
    )(x_flat, w_mat, b_col)

    return out_flat.reshape(N, Cout, Ho, Wo)                # free reshape
    # NOTE(scaling): if N grows to dozens of images, reintroduce a batch grid
    # axis marked "parallel" (feeds v7x's two TensorCores); if H*W grows, tile
    # the lane axis into 512-2048-lane blocks sized against v7x's 64 MiB VMEM
    # (raise vmem_limit_bytes via pltpu.CompilerParams if needed). At 324 lanes
    # only the tail vreg per row is masked, so rounding up to 384 is not worth
    # the extra wrapper slice here.


def _reference(x_nchw, weight, bias):
    # Pure-JAX reference (same math as the torch module's live path).
    w = weight.reshape(weight.shape[0], weight.shape[1])     # (Cout, Cin)
    xp = jnp.pad(x_nchw, ((0, 0), (0, 0), (1, 1), (1, 1)))
    v1 = jnp.einsum("oc,nchw->nohw", w, xp) + bias[None, :, None, None]
    return v1 * jnp.sign(v1)


if __name__ == "__main__":
    key = jax.random.PRNGKey(0)
    k_x, k_w, k_b = jax.random.split(key, 3)

    # Small shapes consistent with the module: Cin=3 -> Cout=8, 1x1 conv, pad=1.
    N, Cin, H, W = 2, 3, 16, 16
    Cout = 8

    x = jax.random.normal(k_x, (N, Cin, H, W), dtype=jnp.float32)
    weight = jax.random.normal(k_w, (Cout, Cin, 1, 1), dtype=jnp.float32) * 0.1
    bias = jax.random.normal(k_b, (Cout,), dtype=jnp.float32) * 0.1

    fn = jax.jit(conv1x1_pad1_abs)
    out = jax.block_until_ready(fn(x, weight, bias))

    ref = _reference(x, weight, bias)
    assert out.shape == (N, Cout, H + 2, W + 2), out.shape
    assert jnp.allclose(out, ref, atol=1e-5, rtol=1e-5), \
        float(jnp.max(jnp.abs(out - ref)))
    print("KERNEL_OK")
</pallas_src>

<mosaic_0001>
module attributes {stable_mosaic.version = 11 : i64} {
  func.func @_conv1x1_abs_kernel(%arg0: memref<2x3x324xf32, #tpu.memory_space<vmem>>, %arg1: memref<8x3xf32, #tpu.memory_space<vmem>>, %arg2: memref<8x1xf32, #tpu.memory_space<vmem>>, %arg3: memref<2x8x324xf32, #tpu.memory_space<vmem>>) attributes {dimension_semantics = [], scalar_prefetch = 0 : i64, scratch_operands = 0 : i64, tpu.core_type = #tpu.core_type<tc>} {
    %c0 = arith.constant 0 : index
    %c0_0 = arith.constant 0 : index
    %c0_1 = arith.constant 0 : index
    %0 = vector.load %arg0[%c0, %c0_0, %c0_1] : memref<2x3x324xf32, #tpu.memory_space<vmem>>, vector<2x3x324xf32>
    %c0_2 = arith.constant 0 : index
    %c0_3 = arith.constant 0 : index
    %1 = vector.load %arg1[%c0_2, %c0_3] : memref<8x3xf32, #tpu.memory_space<vmem>>, vector<8x3xf32>
    %c0_4 = arith.constant 0 : index
    %c0_5 = arith.constant 0 : index
    %2 = vector.load %arg2[%c0_4, %c0_5] : memref<8x1xf32, #tpu.memory_space<vmem>>, vector<8x1xf32>
    %3 = vector.extract_strided_slice %1 {offsets = [0, 0], sizes = [8, 1], strides = [1, 1]} : vector<8x3xf32> to vector<8x1xf32>
    %4 = vector.shape_cast %3 : vector<8x1xf32> to vector<1x8x1xf32>
    %5 = vector.extract_strided_slice %0 {offsets = [0, 0, 0], sizes = [2, 1, 324], strides = [1, 1, 1]} : vector<2x3x324xf32> to vector<2x1x324xf32>
    %6 = vector.broadcast %4 : vector<1x8x1xf32> to vector<2x8x324xf32>
    %7 = vector.broadcast %5 : vector<2x1x324xf32> to vector<2x8x324xf32>
    %8 = arith.mulf %6, %7 : vector<2x8x324xf32>
    %9 = vector.extract_strided_slice %1 {offsets = [0, 1], sizes = [8, 1], strides = [1, 1]} : vector<8x3xf32> to vector<8x1xf32>
    %10 = vector.shape_cast %9 : vector<8x1xf32> to vector<1x8x1xf32>
    %11 = vector.extract_strided_slice %0 {offsets = [0, 1, 0], sizes = [2, 1, 324], strides = [1, 1, 1]} : vector<2x3x324xf32> to vector<2x1x324xf32>
    %12 = vector.broadcast %10 : vector<1x8x1xf32> to vector<2x8x324xf32>
    %13 = vector.broadcast %11 : vector<2x1x324xf32> to vector<2x8x324xf32>
    %14 = arith.mulf %12, %13 : vector<2x8x324xf32>
    %15 = arith.addf %8, %14 : vector<2x8x324xf32>
    %16 = vector.extract_strided_slice %1 {offsets = [0, 2], sizes = [8, 1], strides = [1, 1]} : vector<8x3xf32> to vector<8x1xf32>
    %17 = vector.shape_cast %16 : vector<8x1xf32> to vector<1x8x1xf32>
    %18 = vector.extract_strided_slice %0 {offsets = [0, 2, 0], sizes = [2, 1, 324], strides = [1, 1, 1]} : vector<2x3x324xf32> to vector<2x1x324xf32>
    %19 = vector.broadcast %17 : vector<1x8x1xf32> to vector<2x8x324xf32>
    %20 = vector.broadcast %18 : vector<2x1x324xf32> to vector<2x8x324xf32>
    %21 = arith.mulf %19, %20 : vector<2x8x324xf32>
    %22 = arith.addf %15, %21 : vector<2x8x324xf32>
    %23 = vector.shape_cast %2 : vector<8x1xf32> to vector<1x8x1xf32>
    %24 = vector.broadcast %23 : vector<1x8x1xf32> to vector<2x8x324xf32>
    %25 = arith.addf %22, %24 : vector<2x8x324xf32>
    %26 = math.absf %25 : vector<2x8x324xf32>
    %c0_6 = arith.constant 0 : index
    %c0_7 = arith.constant 0 : index
    %c0_8 = arith.constant 0 : index
    %27 = vector.load %arg3[%c0_6, %c0_7, %c0_8] : memref<2x8x324xf32, #tpu.memory_space<vmem>>, vector<2x8x324xf32>
    tpu.vector_store %arg3[%c0_6, %c0_7, %c0_8], %26 {strides = array<i32>} : memref<2x8x324xf32, #tpu.memory_space<vmem>>, vector<2x8x324xf32>,
    return
  }
}

</mosaic_0001>

<llo_original>
// kernel: conv1x1_pad1_abs.1
$region0: #{conv1x1_pad1_abs.1}
  #allocation0 [shape = 'u32[]', space=smem, size = 0x4, offset = 0x4, fixed_abs, tag = 'smem constant byte address 0x4 - core index']
  #allocation1 [shape = 'u32[72,128]{1,0:T(1,128)}', space=vmem, size = 0x9000, scoped, tag = 'internal scratch']
  %s0 = inlined_call_operand.vmem [shape: f32[2,3,324], index: 0, kind: input, shape index: {}]
  %s1 = inlined_call_operand.vmem [shape: f32[8,3], index: 1, kind: input, shape index: {}]
  %s2 = inlined_call_operand.vmem [shape: f32[8,1], index: 2, kind: input, shape index: {}]
  %s3 = inlined_call_operand.vmem [shape: f32[2,8,324], index: 3, kind: output, shape index: {}]
  %s4 = sld [smem:[#allocation0]]
  $region22: #{conv1x1_pad1_abs.1} parent=0
    _
  %s6 = ssub.s32 1, %s4
  %s7 = scalar_select 0, %s6, %s4
  // Predicated region
  $region2: #{conv1x1_pad1_abs.1} parent=0 // pred_check
    _
  $region3: #{conv1x1_pad1_abs.1} parent=0 // pred_check_branch
    %9 = sbr.rel (0) target = $region5
  $region4: #{conv1x1_pad1_abs.1} parent=0 // pred_region
    _
  $region5: #{conv1x1_pad1_abs.1} parent=0 // pred_fallthru
    _
  // Predicated region
  $region6: #{conv1x1_pad1_abs.1} parent=0 // pred_check
    _
  $region7: #{conv1x1_pad1_abs.1} parent=0 // pred_check_branch
    %11 = sbr.rel (0) target = $region9
  $region8: #{conv1x1_pad1_abs.1} parent=0 // pred_region
    _
  $region9: #{conv1x1_pad1_abs.1} parent=0 // pred_fallthru
    _
  // Predicated region
  $region10: #{conv1x1_pad1_abs.1} parent=0 // pred_check
    _
  $region11: #{conv1x1_pad1_abs.1} parent=0 // pred_check_branch
    %13 = sbr.rel (0) target = $region13
  $region12: #{conv1x1_pad1_abs.1} parent=0 // pred_region
    _
  $region13: #{conv1x1_pad1_abs.1} parent=0 // pred_fallthru
    _
  %v14 = vld [vmem:[%s0] sm:$0x77]
  %v15 = vld [vmem:[%s0 + $0x8] sm:$0x7]
  %v16 = vld [vmem:[%s0 + $0xc] sm:$0x77]
  %v17 = vld [vmem:[%s0 + $0x14] sm:$0x7]
  %v18 = vld [vmem:[%s1] sm:$0xff]
  %v19 = vld [vmem:[%s2] sm:$0xff]
  %21 = vset.pattern.permute.xlu0 0
  %22 = vperm.xlu0 %21, %v18
  %v23 = vpop.permute.xlu0 %22
  %v29 = vperm.slane %v14, 0
  %v30 = vperm.slane %v14, 4
  %v31 = vperm.slane %v15, 0
  %v32 = vperm.slane %v16, 0
  %v33 = vperm.slane %v16, 4
  %v34 = vperm.slane %v17, 0
  %v41 = vperm.slane %v29, 0
  %v42 = vperm.slane %v30, 0
  %v43 = vperm.slane %v31, 0
  %v44 = vperm.slane %v32, 0
  %v45 = vperm.slane %v33, 0
  %v46 = vperm.slane %v34, 0
  %v47 = vmul.f32 %v23, %v41
  %v48 = vmul.f32 %v23, %v42
  %v49 = vmul.f32 %v23, %v43
  %v50 = vmul.f32 %v23, %v44
  %v51 = vmul.f32 %v23, %v45
  %v52 = vmul.f32 %v23, %v46
  %53 = vset.pattern.permute.xlu0 1
  %54 = vperm.xlu0 %53, %v18
  %v55 = vpop.permute.xlu0 %54
  %v57 = vperm.slane %v14, 1
  %v58 = vperm.slane %v14, 5
  %v59 = vperm.slane %v15, 1
  %v60 = vperm.slane %v16, 1
  %v61 = vperm.slane %v16, 5
  %v62 = vperm.slane %v17, 1
  %v69 = vperm.slane %v57, 1
  %v70 = vperm.slane %v58, 1
  %v71 = vperm.slane %v59, 1
  %v72 = vperm.slane %v60, 1
  %v73 = vperm.slane %v61, 1
  %v74 = vperm.slane %v62, 1
  %v75 = vmul.f32 %v55, %v69
  %v76 = vmul.f32 %v55, %v70
  %v77 = vmul.f32 %v55, %v71
  %v78 = vmul.f32 %v55, %v72
  %v79 = vmul.f32 %v55, %v73
  %v80 = vmul.f32 %v55, %v74
  %v81 = vadd.f32 %v47, %v75
  %v82 = vadd.f32 %v48, %v76
  %v83 = vadd.f32 %v49, %v77
  %v84 = vadd.f32 %v50, %v78
  %v85 = vadd.f32 %v51, %v79
  %v86 = vadd.f32 %v52, %v80
  %87 = vset.pattern.permute.xlu0 2
  %88 = vperm.xlu0 %87, %v18
  %v89 = vpop.permute.xlu0 %88
  %v91 = vperm.slane %v14, 2
  %v92 = vperm.slane %v14, 6
  %v93 = vperm.slane %v15, 2
  %v94 = vperm.slane %v16, 2
  %v95 = vperm.slane %v16, 6
  %v96 = vperm.slane %v17, 2
  %v103 = vperm.slane %v91, 2
  %v104 = vperm.slane %v92, 2
  %v105 = vperm.slane %v93, 2
  %v106 = vperm.slane %v94, 2
  %v107 = vperm.slane %v95, 2
  %v108 = vperm.slane %v96, 2
  %v109 = vmul.f32 %v89, %v103
  %v110 = vmul.f32 %v89, %v104
  %v111 = vmul.f32 %v89, %v105
  %v112 = vmul.f32 %v89, %v106
  %v113 = vmul.f32 %v89, %v107
  %v114 = vmul.f32 %v89, %v108
  %v115 = vadd.f32 %v81, %v109
  %v116 = vadd.f32 %v82, %v110
  %v117 = vadd.f32 %v83, %v111
  %v118 = vadd.f32 %v84, %v112
  %v119 = vadd.f32 %v85, %v113
  %v120 = vadd.f32 %v86, %v114
  %122 = vset.pattern.permute.xlu0 0
  %123 = vperm.xlu0 %122, %v19
  %v124 = vpop.permute.xlu0 %123
  %v126 = vadd.f32 %v115, %v124
  %v127 = vadd.f32 %v116, %v124
  %v128 = vadd.f32 %v117, %v124
  %v129 = vadd.f32 %v118, %v124
  %v130 = vadd.f32 %v119, %v124
  %v131 = vadd.f32 %v120, %v124
  %v132 = vand.u32 2147483647, %v126
  %v133 = vand.u32 2147483647, %v127
  %v134 = vand.u32 2147483647, %v128
  %v135 = vand.u32 2147483647, %v129
  %v136 = vand.u32 2147483647, %v130
  %v137 = vand.u32 2147483647, %v131
  %138 = vst [vmem:[%s3] sm:$0xff] %v132
  %139 = vst [vmem:[%s3 + $0x8] sm:$0xff] %v133
  %vm140 = vcmask 556032
  %141 = vst.msk [vmem:[%s3 + $0x10] sm:$0xff] %vm140, %v134
  %142 = vst [vmem:[%s3 + $0x18] sm:$0xff] %v135
  %143 = vst [vmem:[%s3 + $0x20] sm:$0xff] %v136
  %144 = vst.msk [vmem:[%s3 + $0x28] sm:$0xff] %vm140, %v137
  // Predicated region
  $region14: #{conv1x1_pad1_abs.1} parent=0 // pred_check
    _
  $region15: #{conv1x1_pad1_abs.1} parent=0 // pred_check_branch
    %146 = sbr.rel (0) target = $region17
  $region16: #{conv1x1_pad1_abs.1} parent=0 // pred_region
    _
  $region17: #{conv1x1_pad1_abs.1} parent=0 // pred_fallthru
    _
  // Predicated region
  $region18: #{conv1x1_pad1_abs.1} parent=0 // pred_check
    _
  $region19: #{conv1x1_pad1_abs.1} parent=0 // pred_check_branch
    %148 = sbr.rel (0) target = $region21
  $region20: #{conv1x1_pad1_abs.1} parent=0 // pred_region
    _
  $region21: #{conv1x1_pad1_abs.1} parent=0 // pred_fallthru
    _

</llo_original>
